<compile_context>
chip_gen: v7x
topology: tpu7x:2x2x1
jax: 0.10.0
libtpu: 0.0.40
codegen_flags: <defaults>
</compile_context>

<pallas_src>
import functools

import jax
import jax.numpy as jnp
from jax.experimental import pallas as pl
from jax.experimental.pallas import tpu as pltpu

IN_F = 4
HID = 32
OUT_F = 44
OUT_PAD = 128          # lane-dense (multiple of 128) output width inside the kernel
DEFAULT_TILE_N = 512   # rows per grid step (sweet spot: big enough to amortize
                       # per-step overhead, small enough that h1/h2 live ranges
                       # stay a modest VMEM spill, and >=2 steps for v7x at real
                       # batch sizes)


def _mlp_kernel(x_ref, w1_ref, b1_ref, w2_ref, b2_ref, w3_ref, b3_ref, o_ref):
    # Full hot path (3 matmuls + 2 ReLUs + bias adds) lives in the kernel.
    x = x_ref[...]                                        # (tile_n, 4)
    h1 = jnp.dot(x, w1_ref[...], preferred_element_type=jnp.float32) + b1_ref[...]
    h1 = jnp.maximum(h1, 0.0)                             # ReLU
    h2 = jnp.dot(h1, w2_ref[...], preferred_element_type=jnp.float32) + b2_ref[...]
    h2 = jnp.maximum(h2, 0.0)                             # ReLU
    # w3/b3 are zero-padded to 128 columns -> unmasked, lane-dense stores.
    o_ref[...] = (jnp.dot(h2, w3_ref[...], preferred_element_type=jnp.float32)
                  + b3_ref[...]).astype(o_ref.dtype)


def _round_up(n, m):
    return ((n + m - 1) // m) * m


@functools.partial(jax.jit, static_argnames=("tile_n",))
def event_by_event_nn_forward(x, params, *, tile_n=DEFAULT_TILE_N):
    """x: (N, 4) float32 -> logits (N, 44) float32. Any N >= 1 (padded internally)."""
    w1, b1, w2, b2, w3, b3 = params
    N = x.shape[0]

    # Zero-pad the last layer to a lane-dense 128-wide output. Padded columns
    # are exactly zero, so slicing back to 44 columns is lossless.
    w3p = jnp.zeros((HID, OUT_PAD), w3.dtype).at[:, :OUT_F].set(w3)
    b3p = jnp.zeros((1, OUT_PAD), b3.dtype).at[:, :OUT_F].set(b3)

    # Adapt the tile for small batches (sublane dim must be a multiple of 8),
    # then pad N up to a whole number of tiles. Padded rows are sliced off.
    tile = min(tile_n, max(8, _round_up(N, 8)))
    n_pad = _round_up(N, tile)
    xp = x if n_pad == N else jnp.pad(x, ((0, n_pad - N), (0, 0)))

    grid = (n_pad // tile,)

    # Batch dimension is tiled; all (tiny, ~26 KiB total) weight matrices use a
    # constant block index -> VMEM-resident across every grid step.
    in_specs = [
        pl.BlockSpec((tile, IN_F), lambda i: (i, 0)),     # x tile
        pl.BlockSpec((IN_F, HID), lambda i: (0, 0)),      # w1
        pl.BlockSpec((1, HID), lambda i: (0, 0)),         # b1
        pl.BlockSpec((HID, HID), lambda i: (0, 0)),       # w2
        pl.BlockSpec((1, HID), lambda i: (0, 0)),         # b2
        pl.BlockSpec((HID, OUT_PAD), lambda i: (0, 0)),   # w3 (padded)
        pl.BlockSpec((1, OUT_PAD), lambda i: (0, 0)),     # b3 (padded)
    ]
    out_spec = pl.BlockSpec((tile, OUT_PAD), lambda i: (i, 0))

    out = pl.pallas_call(
        _mlp_kernel,
        out_shape=jax.ShapeDtypeStruct((n_pad, OUT_PAD), jnp.float32),
        grid_spec=pltpu.PrefetchScalarGridSpec(
            num_scalar_prefetch=0,
            grid=grid,
            in_specs=in_specs,
            out_specs=out_spec,
        ),
        compiler_params=pltpu.CompilerParams(
            dimension_semantics=("parallel",)),
    )(xp, w1, b1, w2, b2, w3p, b3p)

    return out[:N, :OUT_F]


def init_params(key):
    """Deterministic init matching torch.nn.Linear's default U(-1/sqrt(fan_in), +...)."""
    ks = jax.random.split(key, 6)

    def linear(kw, kb, fan_in, fan_out):
        bound = 1.0 / jnp.sqrt(jnp.float32(fan_in))
        w = jax.random.uniform(kw, (fan_in, fan_out), jnp.float32, -bound, bound)
        b = jax.random.uniform(kb, (1, fan_out), jnp.float32, -bound, bound)
        return w, b

    w1, b1 = linear(ks[0], ks[1], IN_F, HID)
    w2, b2 = linear(ks[2], ks[3], HID, HID)
    w3, b3 = linear(ks[4], ks[5], HID, OUT_F)
    return (w1, b1, w2, b2, w3, b3)


def reference_forward(x, params):
    w1, b1, w2, b2, w3, b3 = params
    h1 = jnp.maximum(x @ w1 + b1, 0.0)
    h2 = jnp.maximum(h1 @ w2 + b2, 0.0)
    return h2 @ w3 + b3


if __name__ == "__main__":
    key = jax.random.PRNGKey(0)
    k_params, k_x1, k_x2 = jax.random.split(key, 3)

    params = init_params(k_params)

    # Small "set" of 8 events, each with 4 features (consistent with the module).
    x_small = jax.random.normal(k_x1, (8, IN_F), dtype=jnp.float32)
    out_small = jax.block_until_ready(event_by_event_nn_forward(x_small, params))
    assert out_small.shape == (8, OUT_F)
    assert jnp.allclose(out_small, reference_forward(x_small, params),
                        atol=1e-4, rtol=1e-4), "mismatch vs reference (small)"

    # Larger, non-multiple-of-tile batch to exercise the multi-step tiled path
    # (N=1100 -> padded to 1536, grid of 3 steps at tile_n=512).
    x_big = jax.random.normal(k_x2, (1100, IN_F), dtype=jnp.float32)
    out_big = jax.block_until_ready(event_by_event_nn_forward(x_big, params))
    assert out_big.shape == (1100, OUT_F)
    assert jnp.allclose(out_big, reference_forward(x_big, params),
                        atol=1e-4, rtol=1e-4), "mismatch vs reference (big)"

    print("KERNEL_OK")
</pallas_src>

<mosaic_0001>
module attributes {stable_mosaic.version = 11 : i64} {
  func.func @_mlp_kernel(%arg0: i32, %arg1: memref<8x4xf32, #tpu.memory_space<vmem>>, %arg2: memref<4x32xf32, #tpu.memory_space<vmem>>, %arg3: memref<1x32xf32, #tpu.memory_space<vmem>>, %arg4: memref<32x32xf32, #tpu.memory_space<vmem>>, %arg5: memref<1x32xf32, #tpu.memory_space<vmem>>, %arg6: memref<32x128xf32, #tpu.memory_space<vmem>>, %arg7: memref<1x128xf32, #tpu.memory_space<vmem>>, %arg8: memref<8x128xf32, #tpu.memory_space<vmem>>) attributes {dimension_semantics = [#tpu.dimension_semantics<parallel>], iteration_bounds = array<i64: 1>, scalar_prefetch = 0 : i64, scratch_operands = 0 : i64, tpu.core_type = #tpu.core_type<tc>, window_params = [{transform_indices = @transform_0, window_bounds = array<i64: 8, 4>}, {pipeline_mode = #tpu.pipeline_mode<synchronous>, transform_indices = @transform_1, window_bounds = array<i64: 4, 32>}, {pipeline_mode = #tpu.pipeline_mode<synchronous>, transform_indices = @transform_2, window_bounds = array<i64: 1, 32>}, {pipeline_mode = #tpu.pipeline_mode<synchronous>, transform_indices = @transform_3, window_bounds = array<i64: 32, 32>}, {pipeline_mode = #tpu.pipeline_mode<synchronous>, transform_indices = @transform_4, window_bounds = array<i64: 1, 32>}, {pipeline_mode = #tpu.pipeline_mode<synchronous>, transform_indices = @transform_5, window_bounds = array<i64: 32, 128>}, {pipeline_mode = #tpu.pipeline_mode<synchronous>, transform_indices = @transform_6, window_bounds = array<i64: 1, 128>}, {transform_indices = @transform_7, window_bounds = array<i64: 8, 128>}]} {
    %c0 = arith.constant 0 : index
    %c0_0 = arith.constant 0 : index
    %0 = vector.load %arg1[%c0, %c0_0] : memref<8x4xf32, #tpu.memory_space<vmem>>, vector<8x4xf32>
    %c0_1 = arith.constant 0 : index
    %c0_2 = arith.constant 0 : index
    %1 = vector.load %arg2[%c0_1, %c0_2] : memref<4x32xf32, #tpu.memory_space<vmem>>, vector<4x32xf32>
    %cst = arith.constant dense<0.000000e+00> : vector<8x32xf32>
    %2 = tpu.matmul %0, %1, %cst {dimension_numbers = #tpu.dot_dimension_numbers<[1], [0], [0], [1], [0, 0, 1, 1], [], []>} : vector<8x4xf32>, vector<4x32xf32>, vector<8x32xf32> -> vector<8x32xf32>
    %c0_3 = arith.constant 0 : index
    %c0_4 = arith.constant 0 : index
    %3 = vector.load %arg3[%c0_3, %c0_4] : memref<1x32xf32, #tpu.memory_space<vmem>>, vector<1x32xf32>
    %4 = vector.broadcast %3 : vector<1x32xf32> to vector<8x32xf32>
    %5 = arith.addf %2, %4 : vector<8x32xf32>
    %cst_5 = arith.constant 0.000000e+00 : f32
    %6 = vector.broadcast %cst_5 : f32 to vector<8x32xf32>
    %7 = arith.maximumf %5, %6 : vector<8x32xf32>
    %c0_6 = arith.constant 0 : index
    %c0_7 = arith.constant 0 : index
    %8 = vector.load %arg4[%c0_6, %c0_7] : memref<32x32xf32, #tpu.memory_space<vmem>>, vector<32x32xf32>
    %cst_8 = arith.constant dense<0.000000e+00> : vector<8x32xf32>
    %9 = tpu.matmul %7, %8, %cst_8 {dimension_numbers = #tpu.dot_dimension_numbers<[1], [0], [0], [1], [0, 0, 1, 1], [], []>} : vector<8x32xf32>, vector<32x32xf32>, vector<8x32xf32> -> vector<8x32xf32>
    %c0_9 = arith.constant 0 : index
    %c0_10 = arith.constant 0 : index
    %10 = vector.load %arg5[%c0_9, %c0_10] : memref<1x32xf32, #tpu.memory_space<vmem>>, vector<1x32xf32>
    %11 = vector.broadcast %10 : vector<1x32xf32> to vector<8x32xf32>
    %12 = arith.addf %9, %11 : vector<8x32xf32>
    %cst_11 = arith.constant 0.000000e+00 : f32
    %13 = vector.broadcast %cst_11 : f32 to vector<8x32xf32>
    %14 = arith.maximumf %12, %13 : vector<8x32xf32>
    %c0_12 = arith.constant 0 : index
    %c0_13 = arith.constant 0 : index
    %15 = vector.load %arg6[%c0_12, %c0_13] : memref<32x128xf32, #tpu.memory_space<vmem>>, vector<32x128xf32>
    %cst_14 = arith.constant dense<0.000000e+00> : vector<8x128xf32>
    %16 = tpu.matmul %14, %15, %cst_14 {dimension_numbers = #tpu.dot_dimension_numbers<[1], [0], [0], [1], [0, 0, 1, 1], [], []>} : vector<8x32xf32>, vector<32x128xf32>, vector<8x128xf32> -> vector<8x128xf32>
    %c0_15 = arith.constant 0 : index
    %c0_16 = arith.constant 0 : index
    %17 = vector.load %arg7[%c0_15, %c0_16] : memref<1x128xf32, #tpu.memory_space<vmem>>, vector<1x128xf32>
    %18 = vector.broadcast %17 : vector<1x128xf32> to vector<8x128xf32>
    %19 = arith.addf %16, %18 : vector<8x128xf32>
    %c0_17 = arith.constant 0 : index
    %c0_18 = arith.constant 0 : index
    %20 = vector.load %arg8[%c0_17, %c0_18] : memref<8x128xf32, #tpu.memory_space<vmem>>, vector<8x128xf32>
    tpu.vector_store %arg8[%c0_17, %c0_18], %19 {strides = array<i32>} : memref<8x128xf32, #tpu.memory_space<vmem>>, vector<8x128xf32>,
    return
  }
  func.func @transform_0(%arg0: i32) -> (i32, i32) {
    %c0_i32 = arith.constant 0 : i32
    %c0_i32_0 = arith.constant 0 : i32
    return %arg0, %c0_i32 : i32, i32
  }
  func.func @transform_1(%arg0: i32) -> (i32, i32) {
    %c0_i32 = arith.constant 0 : i32
    %c0_i32_0 = arith.constant 0 : i32
    %c0_i32_1 = arith.constant 0 : i32
    return %c0_i32, %c0_i32_0 : i32, i32
  }
  func.func @transform_2(%arg0: i32) -> (i32, i32) {
    %c0_i32 = arith.constant 0 : i32
    %c0_i32_0 = arith.constant 0 : i32
    %c0_i32_1 = arith.constant 0 : i32
    return %c0_i32, %c0_i32_0 : i32, i32
  }
  func.func @transform_3(%arg0: i32) -> (i32, i32) {
    %c0_i32 = arith.constant 0 : i32
    %c0_i32_0 = arith.constant 0 : i32
    %c0_i32_1 = arith.constant 0 : i32
    return %c0_i32, %c0_i32_0 : i32, i32
  }
  func.func @transform_4(%arg0: i32) -> (i32, i32) {
    %c0_i32 = arith.constant 0 : i32
    %c0_i32_0 = arith.constant 0 : i32
    %c0_i32_1 = arith.constant 0 : i32
    return %c0_i32, %c0_i32_0 : i32, i32
  }
  func.func @transform_5(%arg0: i32) -> (i32, i32) {
    %c0_i32 = arith.constant 0 : i32
    %c0_i32_0 = arith.constant 0 : i32
    %c0_i32_1 = arith.constant 0 : i32
    return %c0_i32, %c0_i32_0 : i32, i32
  }
  func.func @transform_6(%arg0: i32) -> (i32, i32) {
    %c0_i32 = arith.constant 0 : i32
    %c0_i32_0 = arith.constant 0 : i32
    %c0_i32_1 = arith.constant 0 : i32
    return %c0_i32, %c0_i32_0 : i32, i32
  }
  func.func @transform_7(%arg0: i32) -> (i32, i32) {
    %c0_i32 = arith.constant 0 : i32
    %c0_i32_0 = arith.constant 0 : i32
    return %arg0, %c0_i32 : i32, i32
  }
}

</mosaic_0001>

<llo_original>
// kernel: event_by_event_nn_forward.1
$region0: #{event_by_event_nn_forward.1}
  #allocation0 [shape = 'u32[]', space=smem, size = 0x4, offset = 0x4, fixed_abs, tag = 'smem constant byte address 0x4 - core index']
  #allocation1 [shape = 'u32[144,128]{1,0:T(1,128)}', space=vmem, size = 0x12000, scoped, tag = 'internal scratch']
  %s0 = inlined_call_operand.vmem [shape: f32[8,4], index: 0, kind: input, shape index: {}]
  %s1 = inlined_call_operand.vmem [shape: f32[4,32], index: 1, kind: input, shape index: {}]
  %s2 = inlined_call_operand.vmem [shape: f32[1,32], index: 2, kind: input, shape index: {}]
  %s3 = inlined_call_operand.vmem [shape: f32[32,32], index: 3, kind: input, shape index: {}]
  %s4 = inlined_call_operand.vmem [shape: f32[1,32], index: 4, kind: input, shape index: {}]
  %s5 = inlined_call_operand.vmem [shape: f32[32,128], index: 5, kind: input, shape index: {}]
  %s6 = inlined_call_operand.vmem [shape: f32[1,128], index: 6, kind: input, shape index: {}]
  %s7 = inlined_call_operand.hbm [shape: f32[8,128], index: 7, kind: output, shape index: {}]
  %s8 = sld [smem:[#allocation0]]
  $region38: #{event_by_event_nn_forward.1} parent=0
    _
  %s10 = ssub.s32 1, %s8
  %s11 = scalar_select 0, %s10, %s8
  $region1: #{event_by_event_nn_forward.1} parent=0
    #allocation2 [shape = 'u8[4096]{0}', space=vmem, size = 0x1000, scoped, tag = 'output window, operand 0, single buffered']
    #allocation3 [shape = 's32[1]{0}', space=sflag, size = 0x4, scoped, tag = 'scoped memory for event_by_event_nn_forward.1']
    %12 = vsyncpa [#allocation3], 0
    // Predicated region
    $region2: #{event_by_event_nn_forward.1} parent=1 // pred_check
      _
    $region3: #{event_by_event_nn_forward.1} parent=1 // pred_check_branch
      %14 = sbr.rel (0) target = $region5
    $region4: #{event_by_event_nn_forward.1} parent=1 // pred_region
      _
    $region5: #{event_by_event_nn_forward.1} parent=1 // pred_fallthru
      _
    // Predicated region
    $region6: #{event_by_event_nn_forward.1} parent=1 // pred_check
      _
    $region7: #{event_by_event_nn_forward.1} parent=1 // pred_check_branch
      %16 = sbr.rel (0) target = $region9
    $region8: #{event_by_event_nn_forward.1} parent=1 // pred_region
      _
    $region9: #{event_by_event_nn_forward.1} parent=1 // pred_fallthru
      _
    // Predicated region
    $region10: #{event_by_event_nn_forward.1} parent=1 // pred_check
      _
    $region11: #{event_by_event_nn_forward.1} parent=1 // pred_check_branch
      %18 = sbr.rel (0) target = $region13
    $region12: #{event_by_event_nn_forward.1} parent=1 // pred_region
      _
    $region13: #{event_by_event_nn_forward.1} parent=1 // pred_fallthru
      _
    // Predicated region
    $region14: #{event_by_event_nn_forward.1} parent=1 // pred_check
      _
    $region15: #{event_by_event_nn_forward.1} parent=1 // pred_check_branch
      %20 = sbr.rel (0) target = $region17
    $region16: #{event_by_event_nn_forward.1} parent=1 // pred_region
      _
    $region17: #{event_by_event_nn_forward.1} parent=1 // pred_fallthru
      _
    // Predicated region
    $region18: #{event_by_event_nn_forward.1} parent=1 // pred_check
      _
    $region19: #{event_by_event_nn_forward.1} parent=1 // pred_check_branch
      %22 = sbr.rel (0) target = $region21
    $region20: #{event_by_event_nn_forward.1} parent=1 // pred_region
      _
    $region21: #{event_by_event_nn_forward.1} parent=1 // pred_fallthru
      _
    // Predicated region
    $region22: #{event_by_event_nn_forward.1} parent=1 // pred_check
      _
    $region23: #{event_by_event_nn_forward.1} parent=1 // pred_check_branch
      %24 = sbr.rel (0) target = $region25
    $region24: #{event_by_event_nn_forward.1} parent=1 // pred_region
      _
    $region25: #{event_by_event_nn_forward.1} parent=1 // pred_fallthru
      _
    // Predicated region
    $region26: #{event_by_event_nn_forward.1} parent=1 // pred_check
      _
    $region27: #{event_by_event_nn_forward.1} parent=1 // pred_check_branch
      %26 = sbr.rel (0) target = $region29
    $region28: #{event_by_event_nn_forward.1} parent=1 // pred_region
      _
    $region29: #{event_by_event_nn_forward.1} parent=1 // pred_fallthru
      _
    %v27 = vld [vmem:[%s0] sm:$0xff]
    %v28 = vld [vmem:[%s1] sm:$0xf]
    %v29 = vld [vmem:[%s2] sm:$0x1]
    %v31 = vlaneseq
    %v32 = vshrl.u32 %v31, 7
    %v33 = vsub.s32 0, %v32
    %v34 = vrot.slane %v29, %v33
    %vm36 = vcmask 31744
    %v38 = vsel %vm36, %v27, 0
    %vm40 = vcmask 1043456
    %v42 = vsel %vm40, %v28, 0
    %44 = vmatprep.subr.mxu0 0.0
    %45 = vmatpush1.msra.mxu0 %v42
    %46 = vmatprep.subr.mxu0 0.0
    %47 = vmatpush1.msra.mxu0 0.0
    %48 = vmatprep.subr.mxu0 0.0
    %49 = vmatpush1.msra.mxu0 0.0
    %50 = vmatprep.subr.mxu0 0.0
    %51 = vmatpush1.msra.mxu0 0.0
    %52 = vmatprep.subr.mxu0 0.0
    %53 = vmatpush1.msra.mxu0 0.0
    %54 = vmatprep.subr.mxu0 0.0
    %55 = vmatpush1.msra.mxu0 0.0
    %56 = vmatprep.subr.mxu0 0.0
    %57 = vmatpush1.msra.mxu0 0.0
    %58 = vmatprep.subr.mxu0 0.0
    %59 = vmatpush1.msra.mxu0 0.0
    %60 = vmatprep.subr.mxu0 0.0
    %61 = vmatpush1.msra.mxu0 0.0
    %62 = vmatprep.subr.mxu0 0.0
    %63 = vmatpush1.msra.mxu0 0.0
    %64 = vmatprep.subr.mxu0 0.0
    %65 = vmatpush1.msra.mxu0 0.0
    %66 = vmatprep.subr.mxu0 0.0
    %67 = vmatpush1.msra.mxu0 0.0
    %68 = vmatprep.subr.mxu0 0.0
    %69 = vmatpush1.msra.mxu0 0.0
    %70 = vmatprep.subr.mxu0 0.0
    %71 = vmatpush1.msra.mxu0 0.0
    %72 = vmatprep.subr.mxu0 0.0
    %73 = vmatpush1.msra.mxu0 0.0
    %74 = vmatprep.subr.mxu0 0.0
    %75 = vmatpush1.msra.mxu0 0.0
    %76 = vmatprep.subr.mxu0 0.0
    %77 = vmatpush1.msra.mxu0 0.0
    %78 = vmatprep.subr.mxu0 0.0
    %79 = vmatpush1.msra.mxu0 0.0
    %80 = vmatprep.subr.mxu0 0.0
    %81 = vmatpush1.msra.mxu0 0.0
    %82 = vmatprep.subr.mxu0 0.0
    %83 = vmatpush1.msra.mxu0 0.0
    %84 = vmatprep.subr.mxu0 0.0
    %85 = vmatpush1.msra.mxu0 0.0
    %86 = vmatprep.subr.mxu0 0.0
    %87 = vmatpush1.msra.mxu0 0.0
    %88 = vmatprep.subr.mxu0 0.0
    %89 = vmatpush1.msra.mxu0 0.0
    %90 = vmatprep.subr.mxu0 0.0
    %91 = vmatpush1.msra.mxu0 0.0
    %92 = vmatprep.subr.mxu0 0.0
    %93 = vmatpush1.msra.mxu0 0.0
    %94 = vmatprep.subr.mxu0 0.0
    %95 = vmatpush1.msra.mxu0 0.0
    %96 = vmatprep.subr.mxu0 0.0
    %97 = vmatpush1.msra.mxu0 0.0
    %98 = vmatprep.subr.mxu0 0.0
    %99 = vmatpush1.msra.mxu0 0.0
    %100 = vmatprep.subr.mxu0 0.0
    %101 = vmatpush1.msra.mxu0 0.0
    %102 = vmatprep.subr.mxu0 0.0
    %103 = vmatpush1.msra.mxu0 0.0
    %104 = vmatprep.subr.mxu0 0.0
    %105 = vmatpush1.msra.mxu0 0.0
    %106 = vmatprep.subr.mxu0 0.0
    %107 = vmatpush1.msra.mxu0 0.0
    %108 = vmatprep.mubr.f32.mxu0 0.0
    %109 = vmatmul.mubr.f32.gmra.mrb[0].mxu0 %v38
    %v110 = vpop.f32.mrb[0].mxu0
    %v111 = vadd.f32 %v34, %v110
    %v112 = vpop.f32.mrb[0].mxu0
    %113 = vdwg.mxu0
    %v114 = vmax.f32 %v111, 0.0
    %v115 = vld [vmem:[%s3] sm:$0xff]
    %v116 = vld [vmem:[%s3 + $0x8] sm:$0xff]
    %v117 = vld [vmem:[%s3 + $0x10] sm:$0xff]
    %v118 = vld [vmem:[%s3 + $0x18] sm:$0xff]
    %v119 = vld [vmem:[%s4] sm:$0x1]
    %v121 = vlaneseq
    %v122 = vshrl.u32 %v121, 7
    %v123 = vsub.s32 0, %v122
    %v124 = vrot.slane %v119, %v123
    %vm126 = vcmask 261120
    %v128 = vsel %vm126, %v114, 0
    %130 = vmatprep.subr.mxu0 0.0
    %131 = vmatpush1.msra.mxu0 %v115
    %132 = vmatprep.subr.mxu0 0.0
    %133 = vmatpush1.msra.mxu0 %v116
    %134 = vmatprep.subr.mxu0 0.0
    %135 = vmatpush1.msra.mxu0 %v117
    %136 = vmatprep.subr.mxu0 0.0
    %137 = vmatpush1.msra.mxu0 %v118
    %138 = vmatprep.subr.mxu0 0.0
    %139 = vmatpush1.msra.mxu0 0.0
    %140 = vmatprep.subr.mxu0 0.0
    %141 = vmatpush1.msra.mxu0 0.0
    %142 = vmatprep.subr.mxu0 0.0
    %143 = vmatpush1.msra.mxu0 0.0
    %144 = vmatprep.subr.mxu0 0.0
    %145 = vmatpush1.msra.mxu0 0.0
    %146 = vmatprep.subr.mxu0 0.0
    %147 = vmatpush1.msra.mxu0 0.0
    %148 = vmatprep.subr.mxu0 0.0
    %149 = vmatpush1.msra.mxu0 0.0
    %150 = vmatprep.subr.mxu0 0.0
    %151 = vmatpush1.msra.mxu0 0.0
    %152 = vmatprep.subr.mxu0 0.0
    %153 = vmatpush1.msra.mxu0 0.0
    %154 = vmatprep.subr.mxu0 0.0
    %155 = vmatpush1.msra.mxu0 0.0
    %156 = vmatprep.subr.mxu0 0.0
    %157 = vmatpush1.msra.mxu0 0.0
    %158 = vmatprep.subr.mxu0 0.0
    %159 = vmatpush1.msra.mxu0 0.0
    %160 = vmatprep.subr.mxu0 0.0
    %161 = vmatpush1.msra.mxu0 0.0
    %162 = vmatprep.subr.mxu0 0.0
    %163 = vmatpush1.msra.mxu0 0.0
    %164 = vmatprep.subr.mxu0 0.0
    %165 = vmatpush1.msra.mxu0 0.0
    %166 = vmatprep.subr.mxu0 0.0
    %167 = vmatpush1.msra.mxu0 0.0
    %168 = vmatprep.subr.mxu0 0.0
    %169 = vmatpush1.msra.mxu0 0.0
    %170 = vmatprep.subr.mxu0 0.0
    %171 = vmatpush1.msra.mxu0 0.0
    %172 = vmatprep.subr.mxu0 0.0
    %173 = vmatpush1.msra.mxu0 0.0
    %174 = vmatprep.subr.mxu0 0.0
    %175 = vmatpush1.msra.mxu0 0.0
    %176 = vmatprep.subr.mxu0 0.0
    %177 = vmatpush1.msra.mxu0 0.0
    %178 = vmatprep.subr.mxu0 0.0
    %179 = vmatpush1.msra.mxu0 0.0
    %180 = vmatprep.subr.mxu0 0.0
    %181 = vmatpush1.msra.mxu0 0.0
    %182 = vmatprep.subr.mxu0 0.0
    %183 = vmatpush1.msra.mxu0 0.0
    %184 = vmatprep.subr.mxu0 0.0
    %185 = vmatpush1.msra.mxu0 0.0
    %186 = vmatprep.subr.mxu0 0.0
    %187 = vmatpush1.msra.mxu0 0.0
    %188 = vmatprep.subr.mxu0 0.0
    %189 = vmatpush1.msra.mxu0 0.0
    %190 = vmatprep.subr.mxu0 0.0
    %191 = vmatpush1.msra.mxu0 0.0
    %192 = vmatprep.subr.mxu0 0.0
    %193 = vmatpush1.msra.mxu0 0.0
    %194 = vmatprep.mubr.f32.mxu0 0.0
    %195 = vmatmul.mubr.f32.gmra.mrb[0].mxu0 %v128
    %v196 = vpop.f32.mrb[0].mxu0
    %v197 = vadd.f32 %v124, %v196
    %v198 = vpop.f32.mrb[0].mxu0
    %199 = vdwg.mxu0
    %v200 = vmax.f32 %v197, 0.0
    %v201 = vld [vmem:[%s5] sm:$0xff]
    %v202 = vld [vmem:[%s5 + $0x8] sm:$0xff]
    %v203 = vld [vmem:[%s5 + $0x10] sm:$0xff]
    %v204 = vld [vmem:[%s5 + $0x18] sm:$0xff]
    %v205 = vld [vmem:[%s6] sm:$0x1]
    %v207 = vlaneseq
    %v208 = vshrl.u32 %v207, 7
    %v209 = vsub.s32 0, %v208
    %v210 = vrot.slane %v205, %v209
    %v213 = vsel %vm126, %v200, 0
    %215 = vmatprep.subr.mxu0 0.0
    %216 = vmatpush1.msra.mxu0 %v201
    %217 = vmatprep.subr.mxu0 0.0
    %218 = vmatpush1.msra.mxu0 %v202
    %219 = vmatprep.subr.mxu0 0.0
    %220 = vmatpush1.msra.mxu0 %v203
    %221 = vmatprep.subr.mxu0 0.0
    %222 = vmatpush1.msra.mxu0 %v204
    %223 = vmatprep.subr.mxu0 0.0
    %224 = vmatpush1.msra.mxu0 0.0
    %225 = vmatprep.subr.mxu0 0.0
    %226 = vmatpush1.msra.mxu0 0.0
    %227 = vmatprep.subr.mxu0 0.0
    %228 = vmatpush1.msra.mxu0 0.0
    %229 = vmatprep.subr.mxu0 0.0
    %230 = vmatpush1.msra.mxu0 0.0
    %231 = vmatprep.subr.mxu0 0.0
    %232 = vmatpush1.msra.mxu0 0.0
    %233 = vmatprep.subr.mxu0 0.0
    %234 = vmatpush1.msra.mxu0 0.0
    %235 = vmatprep.subr.mxu0 0.0
    %236 = vmatpush1.msra.mxu0 0.0
    %237 = vmatprep.subr.mxu0 0.0
    %238 = vmatpush1.msra.mxu0 0.0
    %239 = vmatprep.subr.mxu0 0.0
    %240 = vmatpush1.msra.mxu0 0.0
    %241 = vmatprep.subr.mxu0 0.0
    %242 = vmatpush1.msra.mxu0 0.0
    %243 = vmatprep.subr.mxu0 0.0
    %244 = vmatpush1.msra.mxu0 0.0
    %245 = vmatprep.subr.mxu0 0.0
    %246 = vmatpush1.msra.mxu0 0.0
    %247 = vmatprep.subr.mxu0 0.0
    %248 = vmatpush1.msra.mxu0 0.0
    %249 = vmatprep.subr.mxu0 0.0
    %250 = vmatpush1.msra.mxu0 0.0
    %251 = vmatprep.subr.mxu0 0.0
    %252 = vmatpush1.msra.mxu0 0.0
    %253 = vmatprep.subr.mxu0 0.0
    %254 = vmatpush1.msra.mxu0 0.0
    %255 = vmatprep.subr.mxu0 0.0
    %256 = vmatpush1.msra.mxu0 0.0
    %257 = vmatprep.subr.mxu0 0.0
    %258 = vmatpush1.msra.mxu0 0.0
    %259 = vmatprep.subr.mxu0 0.0
    %260 = vmatpush1.msra.mxu0 0.0
    %261 = vmatprep.subr.mxu0 0.0
    %262 = vmatpush1.msra.mxu0 0.0
    %263 = vmatprep.subr.mxu0 0.0
    %264 = vmatpush1.msra.mxu0 0.0
    %265 = vmatprep.subr.mxu0 0.0
    %266 = vmatpush1.msra.mxu0 0.0
    %267 = vmatprep.subr.mxu0 0.0
    %268 = vmatpush1.msra.mxu0 0.0
    %269 = vmatprep.subr.mxu0 0.0
    %270 = vmatpush1.msra.mxu0 0.0
    %271 = vmatprep.subr.mxu0 0.0
    %272 = vmatpush1.msra.mxu0 0.0
    %273 = vmatprep.subr.mxu0 0.0
    %274 = vmatpush1.msra.mxu0 0.0
    %275 = vmatprep.subr.mxu0 0.0
    %276 = vmatpush1.msra.mxu0 0.0
    %277 = vmatprep.subr.mxu0 0.0
    %278 = vmatpush1.msra.mxu0 0.0
    %279 = vmatprep.mubr.f32.mxu0 0.0
    %280 = vmatmul.mubr.f32.gmra.mrb[0].mxu0 %v213
    %v281 = vpop.f32.mrb[0].mxu0
    %v282 = vadd.f32 %v210, %v281
    %v283 = vpop.f32.mrb[0].mxu0
    %284 = vdwg.mxu0
    %285 = vst [vmem:[#allocation2] sm:$0xff] %v282
    // Predicated region
    $region30: #{event_by_event_nn_forward.1} parent=1 // pred_check
      _
    $region31: #{event_by_event_nn_forward.1} parent=1 // pred_check_branch
      %287 = sbr.rel (0) target = $region33
    $region32: #{event_by_event_nn_forward.1} parent=1 // pred_region
      %s289 = ssub.s32 128, 128
      %290 = vsyncadd [#allocation3], %s289
      %s292 = sshll.u32 [#allocation2], 4
      %s293 = int_to_ptr.vmem [resolvable:$true] %s292
      %295 = dma.vmem_to_hbm [thread:$0]  %s293, 128, %s7, [#allocation3]
    $region33: #{event_by_event_nn_forward.1} parent=1 // pred_fallthru
      _
    // Predicated region
    $region34: #{event_by_event_nn_forward.1} parent=1 // pred_check
      _
    $region35: #{event_by_event_nn_forward.1} parent=1 // pred_check_branch
      %297 = sbr.rel (0) target = $region37
    $region36: #{event_by_event_nn_forward.1} parent=1 // pred_region
      %298 = dma.done [#allocation3], 128
    $region37: #{event_by_event_nn_forward.1} parent=1 // pred_fallthru
      _
    %299 = vsyncpa [#allocation3], 1

</llo_original>
